<compile_context>
chip_gen: v7x
topology: tpu7x:2x2x1
jax: 0.10.0
libtpu: 0.0.40
codegen_flags: <defaults>
</compile_context>

<pallas_src>
import math
import functools

import numpy as np
import jax
import jax.numpy as jnp
from jax.experimental import pallas as pl
from jax.experimental.pallas import tpu as pltpu


# ----------------------------------------------------------------------------
# Buffer setup (matches PositionalEncoding.__init__)
# ----------------------------------------------------------------------------
def make_positional_encoding(max_len: int, d_model: int) -> jnp.ndarray:
    position = jnp.arange(0, max_len, dtype=jnp.float32)[:, None]            # (L, 1)
    div_term = jnp.exp(
        jnp.arange(0, d_model, 2, dtype=jnp.float32) * (-math.log(10000.0) / d_model)
    )                                                                         # (D/2,)
    pe = jnp.zeros((max_len, d_model), dtype=jnp.float32)
    pe = pe.at[:, 0::2].set(jnp.sin(position * div_term))
    pe = pe.at[:, 1::2].set(jnp.cos(position * div_term))
    # torch: pe.unsqueeze(0).transpose(0, 1) -> (max_len, 1, d_model)
    return pe[:, None, :]


def _dropout_bits(key, shape):
    # Deterministic uint32 random bits for the dropout mask.
    return jax.random.bits(key, shape, jnp.uint32)


def _pick_tile_rows(S: int, B: int, D: int, itemsize: int,
                    target_bytes: int = 1 << 20) -> int:
    """Largest row-tile TS that (a) keeps the x tile ~target_bytes and
    (b) divides S exactly (no ragged last tile)."""
    row_bytes = max(1, B * D * itemsize)
    ts = max(1, min(S, target_bytes // row_bytes))
    while S % ts:
        ts -= 1
    return ts


# ----------------------------------------------------------------------------
# Pallas kernel: add PE (broadcast over batch) + inverted dropout
# ----------------------------------------------------------------------------
def pe_dropout_kernel(x_ref, pe_ref, bits_ref, o_ref, *, p: float):
    # x_ref: (TS, B, D), pe_ref: (TS, 1, D), bits_ref: (TS, B, D) uint32
    y = x_ref[...].astype(jnp.float32) + pe_ref[...].astype(jnp.float32)

    # Inverted dropout (torch semantics): keep w.p. (1-p), scale kept by 1/(1-p).
    # Integer threshold on the top 24 random bits; p is quantized by 2^-24
    # (negligible).  No float conversion of the random bits needed.
    thresh = jnp.int32(int(round(p * (1 << 24))))
    r = (bits_ref[...] >> 8).astype(jnp.int32)        # top 24 bits, int32-safe
    keep = r >= thresh
    scale = jnp.float32(1.0 / (1.0 - p))
    o_ref[...] = jnp.where(keep, y * scale, jnp.float32(0.0)).astype(o_ref.dtype)


# ----------------------------------------------------------------------------
# Wrapper
# ----------------------------------------------------------------------------
def positional_encoding_forward(x, pe, *, p: float = 0.1, train: bool = True,
                                rng=None):
    S, B, D = x.shape
    pe_s = pe[:S]                                     # (S, 1, D)

    if (not train) or p <= 0.0:
        # Dropout is identity: a plain fused XLA add already runs at HBM
        # roofline -> skip the pallas_call (per perf review).
        return (x + pe_s.astype(x.dtype)).astype(x.dtype)

    if rng is None:
        rng = jax.random.PRNGKey(0)
    bits = _dropout_bits(rng, (S, B, D))              # (S, B, D) uint32

    ts = _pick_tile_rows(S, B, D, jnp.dtype(x.dtype).itemsize)
    grid = (S // ts,)
    kernel = functools.partial(pe_dropout_kernel, p=float(p))

    return pl.pallas_call(
        kernel,
        out_shape=jax.ShapeDtypeStruct((S, B, D), x.dtype),
        grid_spec=pltpu.PrefetchScalarGridSpec(
            num_scalar_prefetch=0,
            grid=grid,
            in_specs=[
                pl.BlockSpec((ts, B, D), lambda i: (i, 0, 0)),   # x
                pl.BlockSpec((ts, 1, D), lambda i: (i, 0, 0)),   # pe (bcast over B)
                pl.BlockSpec((ts, B, D), lambda i: (i, 0, 0)),   # dropout bits
            ],
            out_specs=pl.BlockSpec((ts, B, D), lambda i: (i, 0, 0)),
        ),
        compiler_params=pltpu.CompilerParams(
            dimension_semantics=("parallel",)),
    )(x, pe_s, bits)


# ----------------------------------------------------------------------------
# Main
# ----------------------------------------------------------------------------
if __name__ == "__main__":
    S, B, D = 8, 2, 32          # seq_len, batch, d_model (small demo shapes)
    MAX_LEN = 64                # module default is 5000; smaller synthetic table
    P = 0.1

    x = jax.random.normal(jax.random.PRNGKey(0), (S, B, D), dtype=jnp.float32)
    pe = make_positional_encoding(MAX_LEN, D)

    # Eval-mode pass (dropout identity) -> exact check against reference.
    out_eval = jax.block_until_ready(
        positional_encoding_forward(x, pe, p=P, train=False))
    np.testing.assert_allclose(np.asarray(out_eval), np.asarray(x + pe[:S]),
                               rtol=1e-6, atol=1e-6)

    # Training-mode pass through the Pallas kernel.
    drop_key = jax.random.PRNGKey(1234)
    out_train = jax.block_until_ready(
        positional_encoding_forward(x, pe, p=P, train=True, rng=drop_key))
    assert out_train.shape == (S, B, D)

    # Exact reference using the same random bits and the same threshold rule.
    bits = np.asarray(_dropout_bits(drop_key, (S, B, D)))
    keep = (bits >> 8).astype(np.int64) >= int(round(P * (1 << 24)))
    base = np.asarray(x) + np.asarray(pe[:S])
    ref_train = np.where(keep, base * np.float32(1.0 / (1.0 - P)),
                         np.float32(0.0)).astype(np.float32)
    np.testing.assert_allclose(np.asarray(out_train), ref_train,
                               rtol=1e-6, atol=1e-6)

    # Sanity: dropped fraction is in a plausible range for p=0.1.
    drop_frac = float((np.asarray(out_train) == 0.0).mean())
    assert 0.0 <= drop_frac <= 0.5

    print("KERNEL_OK")
</pallas_src>

<mosaic_0001>
module attributes {stable_mosaic.version = 11 : i64} {
  func.func @pe_dropout_kernel(%arg0: i32, %arg1: memref<8x2x32xf32, #tpu.memory_space<vmem>>, %arg2: memref<8x1x32xf32, #tpu.memory_space<vmem>>, %arg3: memref<8x2x32xi32, #tpu.memory_space<vmem>>, %arg4: memref<8x2x32xf32, #tpu.memory_space<vmem>>) attributes {dimension_semantics = [#tpu.dimension_semantics<parallel>], iteration_bounds = array<i64: 1>, scalar_prefetch = 0 : i64, scratch_operands = 0 : i64, tpu.core_type = #tpu.core_type<tc>, window_params = [{transform_indices = @transform_0, window_bounds = array<i64: 8, 2, 32>}, {transform_indices = @transform_1, window_bounds = array<i64: 8, 1, 32>}, {transform_indices = @transform_2, window_bounds = array<i64: 8, 2, 32>}, {transform_indices = @transform_3, window_bounds = array<i64: 8, 2, 32>}]} {
    %c0 = arith.constant 0 : index
    %c0_0 = arith.constant 0 : index
    %c0_1 = arith.constant 0 : index
    %0 = vector.load %arg1[%c0, %c0_0, %c0_1] : memref<8x2x32xf32, #tpu.memory_space<vmem>>, vector<8x2x32xf32>
    %c0_2 = arith.constant 0 : index
    %c0_3 = arith.constant 0 : index
    %c0_4 = arith.constant 0 : index
    %1 = vector.load %arg2[%c0_2, %c0_3, %c0_4] : memref<8x1x32xf32, #tpu.memory_space<vmem>>, vector<8x1x32xf32>
    %2 = vector.broadcast %1 : vector<8x1x32xf32> to vector<8x2x32xf32>
    %3 = arith.addf %0, %2 : vector<8x2x32xf32>
    %c0_5 = arith.constant 0 : index
    %c0_6 = arith.constant 0 : index
    %c0_7 = arith.constant 0 : index
    %4 = vector.load %arg3[%c0_5, %c0_6, %c0_7] : memref<8x2x32xi32, #tpu.memory_space<vmem>>, vector<8x2x32xi32>
    %c8_i32 = arith.constant 8 : i32
    %5 = vector.broadcast %c8_i32 : i32 to vector<8x2x32xi32>
    %6 = arith.shrui %4, %5 : vector<8x2x32xi32>
    %c1677722_i32 = arith.constant 1677722 : i32
    %7 = vector.broadcast %c1677722_i32 : i32 to vector<8x2x32xi32>
    %8 = arith.cmpi sge, %6, %7 : vector<8x2x32xi32>
    %cst = arith.constant 1.11111116 : f32
    %9 = vector.broadcast %cst : f32 to vector<8x2x32xf32>
    %10 = arith.mulf %3, %9 : vector<8x2x32xf32>
    %cst_8 = arith.constant 0.000000e+00 : f32
    %11 = vector.broadcast %cst_8 : f32 to vector<8x2x32xf32>
    %12 = arith.select %8, %10, %11 : vector<8x2x32xi1>, vector<8x2x32xf32>
    %c0_9 = arith.constant 0 : index
    %c0_10 = arith.constant 0 : index
    %c0_11 = arith.constant 0 : index
    %13 = vector.load %arg4[%c0_9, %c0_10, %c0_11] : memref<8x2x32xf32, #tpu.memory_space<vmem>>, vector<8x2x32xf32>
    tpu.vector_store %arg4[%c0_9, %c0_10, %c0_11], %12 {strides = array<i32>} : memref<8x2x32xf32, #tpu.memory_space<vmem>>, vector<8x2x32xf32>,
    return
  }
  func.func @transform_0(%arg0: i32) -> (i32, i32, i32) {
    %c0_i32 = arith.constant 0 : i32
    %c0_i32_0 = arith.constant 0 : i32
    %c0_i32_1 = arith.constant 0 : i32
    return %arg0, %c0_i32, %c0_i32_0 : i32, i32, i32
  }
  func.func @transform_1(%arg0: i32) -> (i32, i32, i32) {
    %c0_i32 = arith.constant 0 : i32
    %c0_i32_0 = arith.constant 0 : i32
    %c0_i32_1 = arith.constant 0 : i32
    return %arg0, %c0_i32, %c0_i32_0 : i32, i32, i32
  }
  func.func @transform_2(%arg0: i32) -> (i32, i32, i32) {
    %c0_i32 = arith.constant 0 : i32
    %c0_i32_0 = arith.constant 0 : i32
    %c0_i32_1 = arith.constant 0 : i32
    return %arg0, %c0_i32, %c0_i32_0 : i32, i32, i32
  }
  func.func @transform_3(%arg0: i32) -> (i32, i32, i32) {
    %c0_i32 = arith.constant 0 : i32
    %c0_i32_0 = arith.constant 0 : i32
    %c0_i32_1 = arith.constant 0 : i32
    return %arg0, %c0_i32, %c0_i32_0 : i32, i32, i32
  }
}

</mosaic_0001>

<llo_original>
// kernel: tpu_custom_call.1
$region0: #{tpu_custom_call.1}
  #allocation0 [shape = 'u32[]', space=smem, size = 0x4, offset = 0x4, fixed_abs, tag = 'smem constant byte address 0x4 - core index']
  #allocation1 [shape = 'u32[144,128]{1,0:T(1,128)}', space=vmem, size = 0x12000, scoped, tag = 'internal scratch']
  %s0 = inlined_call_operand.hbm [shape: f32[8,2,32], index: 0, kind: input, shape index: {}]
  %s1 = inlined_call_operand.hbm [shape: f32[8,1,32], index: 1, kind: input, shape index: {}]
  %s2 = inlined_call_operand.hbm [shape: u32[8,2,32], index: 2, kind: input, shape index: {}]
  %s3 = inlined_call_operand.hbm [shape: f32[8,2,32], index: 3, kind: output, shape index: {}]
  %s4 = sld [smem:[#allocation0]]
  $region34: #{tpu_custom_call.1} parent=0
    _
  %s6 = ssub.s32 1, %s4
  %s7 = scalar_select 0, %s6, %s4
  $region1: #{tpu_custom_call.1} parent=0
    #allocation2 [shape = 'u8[8192]{0}', space=vmem, size = 0x2000, scoped, tag = 'input window, operand 0, single buffered']
    #allocation3 [shape = 's32[1]{0}', space=sflag, size = 0x4, scoped, tag = 'scoped memory for tpu_custom_call.1']
    #allocation4 [shape = 's32[1]{0}', space=sflag, size = 0x4, scoped, tag = 'scoped memory for tpu_custom_call.1']
    #allocation5 [shape = 'u8[4096]{0}', space=vmem, size = 0x1000, scoped, tag = 'input window, operand 1, single buffered']
    #allocation6 [shape = 's32[1]{0}', space=sflag, size = 0x4, scoped, tag = 'scoped memory for tpu_custom_call.1']
    #allocation7 [shape = 'u8[8192]{0}', space=vmem, size = 0x2000, scoped, tag = 'input window, operand 2, single buffered']
    #allocation8 [shape = 'u8[8192]{0}', space=vmem, size = 0x2000, scoped, tag = 'output window, operand 0, single buffered']
    %8 = vsyncpa [#allocation3], 0
    %9 = vsyncpa [#allocation6], 0
    %10 = vsyncpa [#allocation4], 0
    // Predicated region
    $region2: #{tpu_custom_call.1} parent=1 // pred_check
      _
    $region3: #{tpu_custom_call.1} parent=1 // pred_check_branch
      %12 = sbr.rel (0) target = $region5
    $region4: #{tpu_custom_call.1} parent=1 // pred_region
      %s14 = ssub.s32 256, 256
      %15 = vsyncadd [#allocation3], %s14
      %s16 = sshll.u32 [#allocation2], 4
      %s17 = int_to_ptr.vmem [resolvable:$true] %s16
      %22 = dma.hbm_to_vmem [thread:$0]  %s0, 256, %s17, [#allocation3], 32, 32, 2
    $region5: #{tpu_custom_call.1} parent=1 // pred_fallthru
      _
    // Predicated region
    $region6: #{tpu_custom_call.1} parent=1 // pred_check
      _
    $region7: #{tpu_custom_call.1} parent=1 // pred_check_branch
      %24 = sbr.rel (0) target = $region9
    $region8: #{tpu_custom_call.1} parent=1 // pred_region
      %s26 = ssub.s32 128, 128
      %27 = vsyncadd [#allocation6], %s26
      %s28 = sshll.u32 [#allocation5], 4
      %s29 = int_to_ptr.vmem [resolvable:$true] %s28
      %34 = dma.hbm_to_vmem [thread:$0]  %s1, 128, %s29, [#allocation6], 16, 16, 1
    $region9: #{tpu_custom_call.1} parent=1 // pred_fallthru
      _
    // Predicated region
    $region10: #{tpu_custom_call.1} parent=1 // pred_check
      _
    $region11: #{tpu_custom_call.1} parent=1 // pred_check_branch
      %36 = sbr.rel (0) target = $region13
    $region12: #{tpu_custom_call.1} parent=1 // pred_region
      %s38 = ssub.s32 256, 256
      %39 = vsyncadd [#allocation6], %s38
      %s40 = sshll.u32 [#allocation7], 4
      %s41 = int_to_ptr.vmem [resolvable:$true] %s40
      %46 = dma.hbm_to_vmem [thread:$0]  %s2, 256, %s41, [#allocation6], 32, 32, 2
    $region13: #{tpu_custom_call.1} parent=1 // pred_fallthru
      _
    // Predicated region
    $region14: #{tpu_custom_call.1} parent=1 // pred_check
      _
    $region15: #{tpu_custom_call.1} parent=1 // pred_check_branch
      %48 = sbr.rel (0) target = $region17
    $region16: #{tpu_custom_call.1} parent=1 // pred_region
      %49 = dma.done [#allocation3], 256
    $region17: #{tpu_custom_call.1} parent=1 // pred_fallthru
      _
    // Predicated region
    $region18: #{tpu_custom_call.1} parent=1 // pred_check
      _
    $region19: #{tpu_custom_call.1} parent=1 // pred_check_branch
      %51 = sbr.rel (0) target = $region21
    $region20: #{tpu_custom_call.1} parent=1 // pred_region
      %52 = dma.done [#allocation6], 128
    $region21: #{tpu_custom_call.1} parent=1 // pred_fallthru
      _
    // Predicated region
    $region22: #{tpu_custom_call.1} parent=1 // pred_check
      _
    $region23: #{tpu_custom_call.1} parent=1 // pred_check_branch
      %54 = sbr.rel (0) target = $region25
    $region24: #{tpu_custom_call.1} parent=1 // pred_region
      %55 = dma.done [#allocation6], 256
    $region25: #{tpu_custom_call.1} parent=1 // pred_fallthru
      _
    %v56 = vld [vmem:[#allocation2] sm:$0x3]
    %v57 = vld [vmem:[#allocation2 + $0x2] sm:$0x3]
    %v58 = vld [vmem:[#allocation2 + $0x4] sm:$0x3]
    %v59 = vld [vmem:[#allocation2 + $0x6] sm:$0x3]
    %v60 = vld [vmem:[#allocation2 + $0x8] sm:$0x3]
    %v61 = vld [vmem:[#allocation2 + $0xa] sm:$0x3]
    %v62 = vld [vmem:[#allocation2 + $0xc] sm:$0x3]
    %v63 = vld [vmem:[#allocation2 + $0xe] sm:$0x3]
    %v64 = vld [vmem:[#allocation5] sm:$0x1]
    %v65 = vld [vmem:[#allocation5 + $0x1] sm:$0x1]
    %v66 = vld [vmem:[#allocation5 + $0x2] sm:$0x1]
    %v67 = vld [vmem:[#allocation5 + $0x3] sm:$0x1]
    %v68 = vld [vmem:[#allocation5 + $0x4] sm:$0x1]
    %v69 = vld [vmem:[#allocation5 + $0x5] sm:$0x1]
    %v70 = vld [vmem:[#allocation5 + $0x6] sm:$0x1]
    %v71 = vld [vmem:[#allocation5 + $0x7] sm:$0x1]
    %v80 = vlaneseq
    %v81 = vshrl.u32 %v80, 7
    %v82 = vsub.s32 0, %v81
    %v83 = vrot.slane %v64, %v82
    %v84 = vlaneseq
    %v85 = vshrl.u32 %v84, 7
    %v86 = vsub.s32 0, %v85
    %v87 = vrot.slane %v65, %v86
    %v88 = vlaneseq
    %v89 = vshrl.u32 %v88, 7
    %v90 = vsub.s32 0, %v89
    %v91 = vrot.slane %v66, %v90
    %v92 = vlaneseq
    %v93 = vshrl.u32 %v92, 7
    %v94 = vsub.s32 0, %v93
    %v95 = vrot.slane %v67, %v94
    %v96 = vlaneseq
    %v97 = vshrl.u32 %v96, 7
    %v98 = vsub.s32 0, %v97
    %v99 = vrot.slane %v68, %v98
    %v100 = vlaneseq
    %v101 = vshrl.u32 %v100, 7
    %v102 = vsub.s32 0, %v101
    %v103 = vrot.slane %v69, %v102
    %v104 = vlaneseq
    %v105 = vshrl.u32 %v104, 7
    %v106 = vsub.s32 0, %v105
    %v107 = vrot.slane %v70, %v106
    %v108 = vlaneseq
    %v109 = vshrl.u32 %v108, 7
    %v110 = vsub.s32 0, %v109
    %v111 = vrot.slane %v71, %v110
    %v120 = vadd.f32 %v56, %v83
    %v121 = vadd.f32 %v57, %v87
    %v122 = vadd.f32 %v58, %v91
    %v123 = vadd.f32 %v59, %v95
    %v124 = vadd.f32 %v60, %v99
    %v125 = vadd.f32 %v61, %v103
    %v126 = vadd.f32 %v62, %v107
    %v127 = vadd.f32 %v63, %v111
    %v128 = vld [vmem:[#allocation7] sm:$0x3]
    %v129 = vld [vmem:[#allocation7 + $0x2] sm:$0x3]
    %v130 = vld [vmem:[#allocation7 + $0x4] sm:$0x3]
    %v131 = vld [vmem:[#allocation7 + $0x6] sm:$0x3]
    %v132 = vld [vmem:[#allocation7 + $0x8] sm:$0x3]
    %v133 = vld [vmem:[#allocation7 + $0xa] sm:$0x3]
    %v134 = vld [vmem:[#allocation7 + $0xc] sm:$0x3]
    %v135 = vld [vmem:[#allocation7 + $0xe] sm:$0x3]
    %v136 = vshrl.u32 %v128, 8
    %v137 = vshrl.u32 %v129, 8
    %v138 = vshrl.u32 %v130, 8
    %v139 = vshrl.u32 %v131, 8
    %v140 = vshrl.u32 %v132, 8
    %v141 = vshrl.u32 %v133, 8
    %v142 = vshrl.u32 %v134, 8
    %v143 = vshrl.u32 %v135, 8
    %vm144 = vcmp.ge.s32.totalorder %v136, 1677722
    %vm145 = vcmp.ge.s32.totalorder %v137, 1677722
    %vm146 = vcmp.ge.s32.totalorder %v138, 1677722
    %vm147 = vcmp.ge.s32.totalorder %v139, 1677722
    %vm148 = vcmp.ge.s32.totalorder %v140, 1677722
    %vm149 = vcmp.ge.s32.totalorder %v141, 1677722
    %vm150 = vcmp.ge.s32.totalorder %v142, 1677722
    %vm151 = vcmp.ge.s32.totalorder %v143, 1677722
    %v152 = vmul.f32 %v120, 1.1111112
    %v153 = vmul.f32 %v121, 1.1111112
    %v154 = vmul.f32 %v122, 1.1111112
    %v155 = vmul.f32 %v123, 1.1111112
    %v156 = vmul.f32 %v124, 1.1111112
    %v157 = vmul.f32 %v125, 1.1111112
    %v158 = vmul.f32 %v126, 1.1111112
    %v159 = vmul.f32 %v127, 1.1111112
    %v160 = vsel %vm144, %v152, 0.0
    %v161 = vsel %vm145, %v153, 0.0
    %v162 = vsel %vm146, %v154, 0.0
    %v163 = vsel %vm147, %v155, 0.0
    %v164 = vsel %vm148, %v156, 0.0
    %v165 = vsel %vm149, %v157, 0.0
    %v166 = vsel %vm150, %v158, 0.0
    %v167 = vsel %vm151, %v159, 0.0
    %vm168 = vcmask 254976
    %169 = vst.msk [vmem:[#allocation8] sm:$0x3] %vm168, %v160
    %170 = vst.msk [vmem:[#allocation8 + $0x2] sm:$0x3] %vm168, %v161
    %171 = vst.msk [vmem:[#allocation8 + $0x4] sm:$0x3] %vm168, %v162
    %172 = vst.msk [vmem:[#allocation8 + $0x6] sm:$0x3] %vm168, %v163
    %173 = vst.msk [vmem:[#allocation8 + $0x8] sm:$0x3] %vm168, %v164
    %174 = vst.msk [vmem:[#allocation8 + $0xa] sm:$0x3] %vm168, %v165
    %175 = vst.msk [vmem:[#allocation8 + $0xc] sm:$0x3] %vm168, %v166
    %176 = vst.msk [vmem:[#allocation8 + $0xe] sm:$0x3] %vm168, %v167
    // Predicated region
    $region26: #{tpu_custom_call.1} parent=1 // pred_check
      _
    $region27: #{tpu_custom_call.1} parent=1 // pred_check_branch
      %178 = sbr.rel (0) target = $region29
    $region28: #{tpu_custom_call.1} parent=1 // pred_region
      %s180 = ssub.s32 256, 256
      %181 = vsyncadd [#allocation4], %s180
      %s182 = sshll.u32 [#allocation8], 4
      %s183 = int_to_ptr.vmem [resolvable:$true] %s182
      %188 = dma.vmem_to_hbm [thread:$0]  %s183, 256, %s3, [#allocation4], 32, 32, 2
    $region29: #{tpu_custom_call.1} parent=1 // pred_fallthru
      _
    // Predicated region
    $region30: #{tpu_custom_call.1} parent=1 // pred_check
      _
    $region31: #{tpu_custom_call.1} parent=1 // pred_check_branch
      %190 = sbr.rel (0) target = $region33
    $region32: #{tpu_custom_call.1} parent=1 // pred_region
      %191 = dma.done [#allocation4], 256
    $region33: #{tpu_custom_call.1} parent=1 // pred_fallthru
      _
    %192 = vsyncpa [#allocation3], 1
    %193 = vsyncpa [#allocation6], 1
    %194 = vsyncpa [#allocation4], 1

</llo_original>
